<compile_context>
chip_gen: v6e
topology: v6e:2x2x1
jax: 0.10.0
libtpu: 0.0.40
codegen_flags: <defaults>
</compile_context>

<pallas_src>
import jax
import jax.numpy as jnp
from jax.experimental import pallas as pl
from jax.experimental.pallas import tpu as pltpu

LN_EPS = 1e-5


# ----------------------------------------------------------------------------- helpers

def _round_up(x, m):
    return (x + m - 1) // m * m


def _device_kind():
    try:
        return jax.devices()[0].device_kind.lower()
    except Exception:
        return ""


def _use_bf16_epilogue(kind=None):
    """bf16 bias/activation epilogue only on chips with a bf16 VALU (v6e, v7x)."""
    kind = _device_kind() if kind is None else kind
    return ("v6" in kind) or ("v7" in kind)


def _num_tensorcores(kind=None):
    kind = _device_kind() if kind is None else kind
    return 2 if "v7" in kind else 1


def _vmem_cap_bytes(kind=None):
    """0.8x of physical VMEM; query the runtime, fall back on device kind."""
    kind = _device_kind() if kind is None else kind
    phys = None
    try:
        info = pltpu.get_tpu_info()
        phys = getattr(info, "vmem_capacity_bytes", None)
    except Exception:
        phys = None
    if not phys:
        if "v7" in kind:
            phys = 64 * 1024 * 1024
        elif ("v5" in kind) or ("v6" in kind):
            phys = 128 * 1024 * 1024
        else:
            phys = 64 * 1024 * 1024  # conservative for unknown chips
    return int(0.8 * phys)


def _layernorm_no_affine(x):
    """Two-pass LayerNorm (no affine), biased variance — matches torch.nn.LayerNorm."""
    mean = jnp.mean(x, axis=-1, keepdims=True)
    d = x - mean
    var = jnp.mean(d * d, axis=-1, keepdims=True)
    return d * jax.lax.rsqrt(var + LN_EPS)


_ACTIVATIONS = {
    "ReLU": lambda v: jnp.maximum(v, 0.0),
    "Tanh": jnp.tanh,
    "Sigmoid": jax.nn.sigmoid,
    "GELU": jax.nn.gelu,
    "SELU": jax.nn.selu,
}


def _get_activation(af_name):
    if af_name in (None, "None"):
        return None
    if af_name not in _ACTIVATIONS:
        # TODO(synk): map any remaining torch.nn activation names as needed.
        raise NotImplementedError(f"activation {af_name!r} not mapped to a jnp op")
    return _ACTIVATIONS[af_name]


def _make_resident_spec_factory():
    """BlockSpec for grid-invariant operands: single-buffered when supported.

    Returns (factory, buffer_multiplier) — the multiplier feeds the VMEM
    footprint formula so the declared budget matches what is actually buffered.
    """
    try:
        pl.BlockSpec((8, 128), lambda i: (0, 0), pipeline_mode=pl.Buffered(1))

        def make(shape):
            return pl.BlockSpec(shape, lambda i: (0, 0), pipeline_mode=pl.Buffered(1))

        return make, 1
    except Exception:

        def make(shape):
            return pl.BlockSpec(shape, lambda i: (0, 0))

        return make, 2  # default pipelining double-buffers even invariant operands


_RESIDENT_SPEC, _WEIGHT_BUF_MULT = _make_resident_spec_factory()


def _choose_tile_m(B, target, num_cores, fits):
    """Batch tile: multiple of 16 (bf16 sublane packing), divides the 16-rounded
    batch (=> pad <= 15 rows), <= target, fits the VMEM budget, and when possible
    yields >= num_cores grid steps (so v7x's second TensorCore isn't idle)."""
    Bp = _round_up(max(B, 1), 16)
    k = Bp // 16
    tiles = sorted({16 * d for d in range(1, k + 1)
                    if k % d == 0 and 16 * d <= max(target, 16)}, reverse=True)
    preferred = [t for t in tiles if Bp // t >= num_cores] or tiles
    for t in preferred:
        if fits(t):
            return Bp, t
    return Bp, preferred[-1]


# ----------------------------------------------------------------------------- kernel

def _make_encoder_kernel(num_layers, af_fn, norm_in, norm_out, epilogue_bf16):
    """Builds a Pallas kernel: refs = (x, w0, b0, w1, b1, ..., out)."""

    def kernel(*refs):
        x_ref = refs[0]
        o_ref = refs[-1]
        wb_refs = refs[1:-1]

        x = x_ref[...].astype(jnp.float32)
        if norm_in:
            x = _layernorm_no_affine(x)        # LayerNorm always f32

        h = x.astype(jnp.bfloat16)             # bf16 MXU operands
        out = None
        for layer in range(num_layers):
            last = layer == num_layers - 1
            w = wb_refs[2 * layer][...]        # bf16 (in, out), resident
            b = wb_refs[2 * layer + 1][...]    # f32  (1, out),  resident
            # bf16 operands on the MXU, f32 accumulation.
            y = jnp.dot(h, w, preferred_element_type=jnp.float32)
            if last:
                out = y + b.astype(jnp.float32)          # final epilogue in f32
            elif epilogue_bf16:
                # v6e/v7x: bias + activation in bf16 (bf16 VALU), feeds next dot.
                y = y.astype(jnp.bfloat16) + b.astype(jnp.bfloat16)
                h = af_fn(y) if af_fn is not None else y
            else:
                # v5e / unknown: f32 epilogue, cast only for the next MXU pass.
                y = y + b.astype(jnp.float32)
                y = af_fn(y) if af_fn is not None else y
                h = y.astype(jnp.bfloat16)
            # dropout == identity (eval mode)

        if norm_out:
            out = _layernorm_no_affine(out)

        o_ref[...] = out.astype(o_ref.dtype)

    return kernel


# ----------------------------------------------------------------------------- wrapper

def encoder_forward(x, weights_t, biases, *, af_name='ReLU',
                    norm_in=True, norm_out=True, tile_m=None):
    """x: (B, input_size); weights_t[l]: (in_l, out_l); biases[l]: (1, out_l)."""
    B, in_f = x.shape
    num_layers = len(weights_t)
    output_size = weights_t[-1].shape[1]
    af_fn = _get_activation(af_name)

    kind = _device_kind()
    epi_bf16 = _use_bf16_epilogue(kind)
    num_cores = _num_tensorcores(kind)
    vmem_cap = _vmem_cap_bytes(kind)

    # bf16 weights: halve weight DMA/VMEM and hit MXU bf16 peak. Biases stay f32.
    w_bf16 = [w.astype(jnp.bfloat16) for w in weights_t]
    b_f32 = [jnp.asarray(b, jnp.float32).reshape(1, -1) for b in biases]

    out_dtype = x.dtype
    x_item = jnp.dtype(x.dtype).itemsize
    out_item = jnp.dtype(out_dtype).itemsize

    weight_bytes = (sum(w.size * 2 for w in w_bf16) + sum(b.size * 4 for b in b_f32))
    max_w = max(in_f, output_size)

    def footprint(tile):
        # resident weights/biases (x buffer multiplier) + double-buffered x/out
        # tiles + f32 working temporaries inside the body.
        return (_WEIGHT_BUF_MULT * weight_bytes
                + 2 * tile * in_f * x_item
                + 2 * tile * output_size * out_item
                + 4 * tile * max_w * 4)

    # Bigger tiles on 128-MiB-VMEM chips (v5e/v6e); 256 on v7x / unknown.
    if tile_m is None:
        target = 512 if (("v5" in kind or "v6" in kind) and "v7" not in kind) else 256
    else:
        target = tile_m
    Bp, tile_m = _choose_tile_m(B, target, num_cores,
                                lambda t: footprint(t) <= vmem_cap)

    if Bp != B:
        # Bp is B rounded to 16 -> at most 15 pad rows, negligible HBM traffic.
        x = jnp.pad(x, ((0, Bp - B), (0, 0)))
    grid = (Bp // tile_m,)

    bytes_needed = footprint(tile_m)
    # TODO(synk): if bytes_needed > vmem_cap (e.g. fp_size >= ~16k resident
    # layer-0 weight), a K-streamed layer-0 path is required; we still clamp to
    # the cap and let Mosaic report the overflow explicitly.
    vmem_limit = int(min(max(int(1.25 * bytes_needed), 16 * 1024 * 1024), vmem_cap))

    in_specs = [pl.BlockSpec((tile_m, in_f), lambda i: (i, 0))]
    args = [x]
    for w, b in zip(w_bf16, b_f32):
        in_specs.append(_RESIDENT_SPEC(w.shape))
        in_specs.append(_RESIDENT_SPEC(b.shape))
        args.append(w)
        args.append(b)
    out_spec = pl.BlockSpec((tile_m, output_size), lambda i: (i, 0))

    flops = 2 * Bp * sum(int(w.shape[0]) * int(w.shape[1]) for w in w_bf16)
    transcendentals = Bp * (int(bool(norm_in)) + int(bool(norm_out)))
    bytes_accessed = (Bp * in_f * x_item + Bp * output_size * out_item + weight_bytes)
    cost = pl.CostEstimate(flops=flops, transcendentals=transcendentals,
                           bytes_accessed=bytes_accessed)

    kernel = _make_encoder_kernel(num_layers, af_fn, norm_in, norm_out, epi_bf16)

    out = pl.pallas_call(
        kernel,
        out_shape=jax.ShapeDtypeStruct((Bp, output_size), out_dtype),
        grid_spec=pltpu.PrefetchScalarGridSpec(
            num_scalar_prefetch=0,
            grid=grid,
            in_specs=in_specs,
            out_specs=out_spec,
        ),
        compiler_params=pltpu.CompilerParams(
            dimension_semantics=("parallel",),   # megacore-shardable batch axis
            vmem_limit_bytes=vmem_limit,
        ),
        cost_estimate=cost,
    )(*args)
    return out[:B] if Bp != B else out


# ----------------------------------------------------------------------------- params / references

def init_encoder_params(key, input_size, output_size, num_layers):
    """Deterministic init matching nn.Linear + xavier_normal_(weight); W stored as (in, out)."""
    weights_t, biases = [], []
    for n in range(num_layers):
        fan_in = input_size if n == 0 else output_size
        fan_out = output_size
        key, kw, kb = jax.random.split(key, 3)
        std = (2.0 / (fan_in + fan_out)) ** 0.5           # xavier normal
        w_t = jax.random.normal(kw, (fan_in, fan_out), dtype=jnp.float32) * std
        bound = 1.0 / (fan_in ** 0.5)                     # default nn.Linear bias init
        b = jax.random.uniform(kb, (1, fan_out), dtype=jnp.float32,
                               minval=-bound, maxval=bound)
        weights_t.append(w_t)
        biases.append(b)
    return weights_t, biases


def encoder_reference_f32(x, weights_t, biases, *, af_name='ReLU',
                          norm_in=True, norm_out=True):
    """Pure-JAX f32 reference of the PyTorch forward (eval mode)."""
    af_fn = _get_activation(af_name)
    num_layers = len(weights_t)
    h = x.astype(jnp.float32)
    if norm_in:
        h = _layernorm_no_affine(h)
    for i, (w, b) in enumerate(zip(weights_t, biases)):
        h = h @ w.astype(jnp.float32) + jnp.asarray(b, jnp.float32).reshape(1, -1)
        if af_fn is not None and i != num_layers - 1:
            h = af_fn(h)
    if norm_out:
        h = _layernorm_no_affine(h)
    return h


def encoder_reference_kernel_precision(x, weights_t, biases, *, af_name='ReLU',
                                       norm_in=True, norm_out=True,
                                       epilogue_bf16=False):
    """Reference matching the kernel's precision (bf16 dots, f32 acc, chosen epilogue)."""
    af_fn = _get_activation(af_name)
    num_layers = len(weights_t)
    h = x.astype(jnp.float32)
    if norm_in:
        h = _layernorm_no_affine(h)
    h = h.astype(jnp.bfloat16)
    out = None
    for layer, (w, b) in enumerate(zip(weights_t, biases)):
        last = layer == num_layers - 1
        w = w.astype(jnp.bfloat16)
        b = jnp.asarray(b, jnp.float32).reshape(1, -1)
        y = jnp.dot(h, w, preferred_element_type=jnp.float32)
        if last:
            out = y + b
        elif epilogue_bf16:
            y = y.astype(jnp.bfloat16) + b.astype(jnp.bfloat16)
            h = af_fn(y) if af_fn is not None else y
        else:
            y = y + b
            y = af_fn(y) if af_fn is not None else y
            h = y.astype(jnp.bfloat16)
    if norm_out:
        out = _layernorm_no_affine(out)
    return out.astype(x.dtype)


# ----------------------------------------------------------------------------- main

if __name__ == "__main__":
    # Small shapes consistent with the module (scaled down from 2048 -> 1024).
    batch = 16
    input_size = 256
    output_size = 128
    num_layers = 2

    key = jax.random.PRNGKey(0)
    key, kx = jax.random.split(key)
    x = jax.random.normal(kx, (batch, input_size), dtype=jnp.float32)
    weights_t, biases = init_encoder_params(key, input_size, output_size, num_layers)

    epi_bf16 = _use_bf16_epilogue()

    # Config 1: ReLU activation + LayerNorm in/out (mhnreact-style usage).
    out = encoder_forward(x, weights_t, biases,
                          af_name='ReLU', norm_in=True, norm_out=True)
    out = jax.block_until_ready(out)
    assert out.shape == (batch, output_size)
    ref_kp = encoder_reference_kernel_precision(
        x, weights_t, biases, af_name='ReLU', norm_in=True, norm_out=True,
        epilogue_bf16=epi_bf16)
    ref_f32 = encoder_reference_f32(x, weights_t, biases,
                                    af_name='ReLU', norm_in=True, norm_out=True)
    assert jnp.allclose(out, ref_kp, atol=1e-3, rtol=1e-3), "mismatch vs kernel-precision ref"
    assert jnp.allclose(out, ref_f32, atol=1e-1), "mismatch vs f32 reference (loose)"

    # Config 2: module defaults (af='None', no norms) — exercises the other code paths.
    out2 = encoder_forward(x, weights_t, biases,
                           af_name='None', norm_in=False, norm_out=False)
    out2 = jax.block_until_ready(out2)
    ref2 = encoder_reference_kernel_precision(
        x, weights_t, biases, af_name='None', norm_in=False, norm_out=False,
        epilogue_bf16=epi_bf16)
    assert jnp.allclose(out2, ref2, atol=1e-3, rtol=1e-3), "mismatch (default config)"

    print("KERNEL_OK")
</pallas_src>

<mosaic_0001>
module attributes {stable_mosaic.version = 11 : i64} {
  func.func @kernel(%arg0: i32, %arg1: memref<16x256xf32, #tpu.memory_space<vmem>>, %arg2: memref<256x128xbf16, #tpu.memory_space<vmem>>, %arg3: memref<1x128xf32, #tpu.memory_space<vmem>>, %arg4: memref<128x128xbf16, #tpu.memory_space<vmem>>, %arg5: memref<1x128xf32, #tpu.memory_space<vmem>>, %arg6: memref<16x128xf32, #tpu.memory_space<vmem>>) attributes {dimension_semantics = [#tpu.dimension_semantics<parallel>], iteration_bounds = array<i64: 1>, scalar_prefetch = 0 : i64, scratch_operands = 0 : i64, tpu.core_type = #tpu.core_type<tc>, window_params = [{transform_indices = @transform_0, window_bounds = array<i64: 16, 256>}, {pipeline_mode = #tpu.pipeline_mode<synchronous>, transform_indices = @transform_1, window_bounds = array<i64: 256, 128>}, {pipeline_mode = #tpu.pipeline_mode<synchronous>, transform_indices = @transform_2, window_bounds = array<i64: 1, 128>}, {pipeline_mode = #tpu.pipeline_mode<synchronous>, transform_indices = @transform_3, window_bounds = array<i64: 128, 128>}, {pipeline_mode = #tpu.pipeline_mode<synchronous>, transform_indices = @transform_4, window_bounds = array<i64: 1, 128>}, {transform_indices = @transform_5, window_bounds = array<i64: 16, 128>}]} {
    %c0 = arith.constant 0 : index
    %c0_0 = arith.constant 0 : index
    %0 = vector.load %arg1[%c0, %c0_0] : memref<16x256xf32, #tpu.memory_space<vmem>>, vector<16x256xf32>
    %cst = arith.constant dense<0.000000e+00> : vector<16xf32>
    %1 = vector.multi_reduction <add>, %0, %cst [1] : vector<16x256xf32> to vector<16xf32>
    %2 = vector.shape_cast %1 : vector<16xf32> to vector<16x1xf32>
    %cst_1 = arith.constant 2.560000e+02 : f32
    %3 = vector.broadcast %cst_1 : f32 to vector<16x1xf32>
    %4 = arith.divf %2, %3 : vector<16x1xf32>
    %5 = vector.broadcast %4 : vector<16x1xf32> to vector<16x256xf32>
    %6 = arith.subf %0, %5 : vector<16x256xf32>
    %7 = arith.mulf %6, %6 : vector<16x256xf32>
    %cst_2 = arith.constant dense<0.000000e+00> : vector<16xf32>
    %8 = vector.multi_reduction <add>, %7, %cst_2 [1] : vector<16x256xf32> to vector<16xf32>
    %9 = vector.shape_cast %8 : vector<16xf32> to vector<16x1xf32>
    %cst_3 = arith.constant 2.560000e+02 : f32
    %10 = vector.broadcast %cst_3 : f32 to vector<16x1xf32>
    %11 = arith.divf %9, %10 : vector<16x1xf32>
    %cst_4 = arith.constant 9.99999974E-6 : f32
    %12 = vector.broadcast %cst_4 : f32 to vector<16x1xf32>
    %13 = arith.addf %11, %12 : vector<16x1xf32>
    %14 = math.rsqrt %13 : vector<16x1xf32>
    %15 = vector.broadcast %14 : vector<16x1xf32> to vector<16x256xf32>
    %16 = arith.mulf %6, %15 : vector<16x256xf32>
    %17 = arith.truncf %16 : vector<16x256xf32> to vector<16x256xbf16>
    %c0_5 = arith.constant 0 : index
    %c0_6 = arith.constant 0 : index
    %18 = vector.load %arg2[%c0_5, %c0_6] : memref<256x128xbf16, #tpu.memory_space<vmem>>, vector<256x128xbf16>
    %c0_7 = arith.constant 0 : index
    %c0_8 = arith.constant 0 : index
    %19 = vector.load %arg3[%c0_7, %c0_8] : memref<1x128xf32, #tpu.memory_space<vmem>>, vector<1x128xf32>
    %cst_9 = arith.constant dense<0.000000e+00> : vector<16x128xf32>
    %20 = tpu.matmul %17, %18, %cst_9 {dimension_numbers = #tpu.dot_dimension_numbers<[1], [0], [0], [1], [0, 0, 1, 1], [], []>} : vector<16x256xbf16>, vector<256x128xbf16>, vector<16x128xf32> -> vector<16x128xf32>
    %21 = vector.broadcast %19 : vector<1x128xf32> to vector<16x128xf32>
    %22 = arith.addf %20, %21 : vector<16x128xf32>
    %cst_10 = arith.constant 0.000000e+00 : f32
    %23 = vector.broadcast %cst_10 : f32 to vector<16x128xf32>
    %24 = arith.maximumf %22, %23 : vector<16x128xf32>
    %25 = arith.truncf %24 : vector<16x128xf32> to vector<16x128xbf16>
    %c0_11 = arith.constant 0 : index
    %c0_12 = arith.constant 0 : index
    %26 = vector.load %arg4[%c0_11, %c0_12] : memref<128x128xbf16, #tpu.memory_space<vmem>>, vector<128x128xbf16>
    %c0_13 = arith.constant 0 : index
    %c0_14 = arith.constant 0 : index
    %27 = vector.load %arg5[%c0_13, %c0_14] : memref<1x128xf32, #tpu.memory_space<vmem>>, vector<1x128xf32>
    %cst_15 = arith.constant dense<0.000000e+00> : vector<16x128xf32>
    %28 = tpu.matmul %25, %26, %cst_15 {dimension_numbers = #tpu.dot_dimension_numbers<[1], [0], [0], [1], [0, 0, 1, 1], [], []>} : vector<16x128xbf16>, vector<128x128xbf16>, vector<16x128xf32> -> vector<16x128xf32>
    %29 = vector.broadcast %27 : vector<1x128xf32> to vector<16x128xf32>
    %30 = arith.addf %28, %29 : vector<16x128xf32>
    %cst_16 = arith.constant dense<0.000000e+00> : vector<16xf32>
    %31 = vector.multi_reduction <add>, %30, %cst_16 [1] : vector<16x128xf32> to vector<16xf32>
    %32 = vector.shape_cast %31 : vector<16xf32> to vector<16x1xf32>
    %cst_17 = arith.constant 1.280000e+02 : f32
    %33 = vector.broadcast %cst_17 : f32 to vector<16x1xf32>
    %34 = arith.divf %32, %33 : vector<16x1xf32>
    %35 = vector.broadcast %34 : vector<16x1xf32> to vector<16x128xf32>
    %36 = arith.subf %30, %35 : vector<16x128xf32>
    %37 = arith.mulf %36, %36 : vector<16x128xf32>
    %cst_18 = arith.constant dense<0.000000e+00> : vector<16xf32>
    %38 = vector.multi_reduction <add>, %37, %cst_18 [1] : vector<16x128xf32> to vector<16xf32>
    %39 = vector.shape_cast %38 : vector<16xf32> to vector<16x1xf32>
    %cst_19 = arith.constant 1.280000e+02 : f32
    %40 = vector.broadcast %cst_19 : f32 to vector<16x1xf32>
    %41 = arith.divf %39, %40 : vector<16x1xf32>
    %cst_20 = arith.constant 9.99999974E-6 : f32
    %42 = vector.broadcast %cst_20 : f32 to vector<16x1xf32>
    %43 = arith.addf %41, %42 : vector<16x1xf32>
    %44 = math.rsqrt %43 : vector<16x1xf32>
    %45 = vector.broadcast %44 : vector<16x1xf32> to vector<16x128xf32>
    %46 = arith.mulf %36, %45 : vector<16x128xf32>
    %c0_21 = arith.constant 0 : index
    %c0_22 = arith.constant 0 : index
    %47 = vector.load %arg6[%c0_21, %c0_22] : memref<16x128xf32, #tpu.memory_space<vmem>>, vector<16x128xf32>
    tpu.vector_store %arg6[%c0_21, %c0_22], %46 {strides = array<i32>} : memref<16x128xf32, #tpu.memory_space<vmem>>, vector<16x128xf32>,
    return
  }
  func.func @transform_0(%arg0: i32) -> (i32, i32) {
    %c0_i32 = arith.constant 0 : i32
    %c0_i32_0 = arith.constant 0 : i32
    return %arg0, %c0_i32 : i32, i32
  }
  func.func @transform_1(%arg0: i32) -> (i32, i32) {
    %c0_i32 = arith.constant 0 : i32
    %c0_i32_0 = arith.constant 0 : i32
    %c0_i32_1 = arith.constant 0 : i32
    return %c0_i32, %c0_i32_0 : i32, i32
  }
  func.func @transform_2(%arg0: i32) -> (i32, i32) {
    %c0_i32 = arith.constant 0 : i32
    %c0_i32_0 = arith.constant 0 : i32
    %c0_i32_1 = arith.constant 0 : i32
    return %c0_i32, %c0_i32_0 : i32, i32
  }
  func.func @transform_3(%arg0: i32) -> (i32, i32) {
    %c0_i32 = arith.constant 0 : i32
    %c0_i32_0 = arith.constant 0 : i32
    %c0_i32_1 = arith.constant 0 : i32
    return %c0_i32, %c0_i32_0 : i32, i32
  }
  func.func @transform_4(%arg0: i32) -> (i32, i32) {
    %c0_i32 = arith.constant 0 : i32
    %c0_i32_0 = arith.constant 0 : i32
    %c0_i32_1 = arith.constant 0 : i32
    return %c0_i32, %c0_i32_0 : i32, i32
  }
  func.func @transform_5(%arg0: i32) -> (i32, i32) {
    %c0_i32 = arith.constant 0 : i32
    %c0_i32_0 = arith.constant 0 : i32
    return %arg0, %c0_i32 : i32, i32
  }
}

</mosaic_0001>

<llo_original>
// kernel: tpu_custom_call.1
$region0: #{tpu_custom_call.1}
  #allocation0 [shape = 'u32[]', space=smem, size = 0x4, offset = 0x4, fixed_abs, tag = 'smem constant byte address 0x4 - core index']
  #allocation1 [shape = 'u32[144,128]{1,0:T(1,128)}', space=vmem, size = 0x12000, scoped, tag = 'internal scratch']
  %s0 = inlined_call_operand.hbm [shape: f32[16,256], index: 0, kind: input, shape index: {}]
  %s1 = inlined_call_operand.hbm [shape: bf16[256,128], index: 1, kind: input, shape index: {}]
  %s2 = inlined_call_operand.vmem [shape: f32[1,128], index: 2, kind: input, shape index: {}]
  %s3 = inlined_call_operand.hbm [shape: bf16[128,128], index: 3, kind: input, shape index: {}]
  %s4 = inlined_call_operand.vmem [shape: f32[1,128], index: 4, kind: input, shape index: {}]
  %s5 = inlined_call_operand.hbm [shape: f32[16,128], index: 5, kind: output, shape index: {}]
  %s6 = sld [smem:[#allocation0]]
  $region42: #{tpu_custom_call.1} parent=0
    _
  %s8 = ssub.s32 1, %s6
  %s9 = scalar_select 0, %s8, %s6
  $region1: #{tpu_custom_call.1} parent=0
    #allocation2 [shape = 'u8[16384]{0}', space=vmem, size = 0x4000, scoped, tag = 'input window, operand 0, single buffered']
    #allocation3 [shape = 's32[1]{0}', space=sflag, size = 0x4, scoped, tag = 'scoped memory for tpu_custom_call.1']
    #allocation4 [shape = 's32[1]{0}', space=sflag, size = 0x4, scoped, tag = 'scoped memory for tpu_custom_call.1']
    #allocation5 [shape = 'u8[65536]{0}', space=vmem, size = 0x10000, scoped, tag = 'input window, operand 1, single buffered']
    #allocation6 [shape = 's32[1]{0}', space=sflag, size = 0x4, scoped, tag = 'scoped memory for tpu_custom_call.1']
    #allocation7 [shape = 'u8[32768]{0}', space=vmem, size = 0x8000, scoped, tag = 'input window, operand 3, single buffered']
    #allocation8 [shape = 'u8[8192]{0}', space=vmem, size = 0x2000, scoped, tag = 'output window, operand 0, single buffered']
    %10 = vsyncpa [#allocation3], 0
    %11 = vsyncpa [#allocation6], 0
    %12 = vsyncpa [#allocation4], 0
    // Predicated region
    $region2: #{tpu_custom_call.1} parent=1 // pred_check
      _
    $region3: #{tpu_custom_call.1} parent=1 // pred_check_branch
      %14 = sbr.rel (0) target = $region5
    $region4: #{tpu_custom_call.1} parent=1 // pred_region
      %s16 = ssub.s32 512, 512
      %17 = vsyncadd [#allocation3], %s16
      %s18 = sshll.u32 [#allocation2], 4
      %s19 = int_to_ptr.vmem [resolvable:$true] %s18
      %24 = dma.hbm_to_vmem [thread:$0]  %s0, 512, %s19, [#allocation3], 256, 256, 16
    $region5: #{tpu_custom_call.1} parent=1 // pred_fallthru
      _
    // Predicated region
    $region6: #{tpu_custom_call.1} parent=1 // pred_check
      _
    $region7: #{tpu_custom_call.1} parent=1 // pred_check_branch
      %26 = sbr.rel (0) target = $region9
    $region8: #{tpu_custom_call.1} parent=1 // pred_region
      %s28 = ssub.s32 2048, 2048
      %29 = vsyncadd [#allocation6], %s28
      %s30 = sshll.u32 [#allocation5], 4
      %s31 = int_to_ptr.vmem [resolvable:$true] %s30
      %36 = dma.hbm_to_vmem [thread:$0]  %s1, 2048, %s31, [#allocation6], 64, 64, 4
    $region9: #{tpu_custom_call.1} parent=1 // pred_fallthru
      _
    // Predicated region
    $region10: #{tpu_custom_call.1} parent=1 // pred_check
      _
    $region11: #{tpu_custom_call.1} parent=1 // pred_check_branch
      %38 = sbr.rel (0) target = $region13
    $region12: #{tpu_custom_call.1} parent=1 // pred_region
      _
    $region13: #{tpu_custom_call.1} parent=1 // pred_fallthru
      _
    // Predicated region
    $region14: #{tpu_custom_call.1} parent=1 // pred_check
      _
    $region15: #{tpu_custom_call.1} parent=1 // pred_check_branch
      %40 = sbr.rel (0) target = $region17
    $region16: #{tpu_custom_call.1} parent=1 // pred_region
      %s42 = ssub.s32 1024, 1024
      %43 = vsyncadd [#allocation6], %s42
      %s44 = sshll.u32 [#allocation7], 4
      %s45 = int_to_ptr.vmem [resolvable:$true] %s44
      %50 = dma.hbm_to_vmem [thread:$0]  %s3, 1024, %s45, [#allocation6], 64, 64, 4
    $region17: #{tpu_custom_call.1} parent=1 // pred_fallthru
      _
    // Predicated region
    $region18: #{tpu_custom_call.1} parent=1 // pred_check
      _
    $region19: #{tpu_custom_call.1} parent=1 // pred_check_branch
      %52 = sbr.rel (0) target = $region21
    $region20: #{tpu_custom_call.1} parent=1 // pred_region
      _
    $region21: #{tpu_custom_call.1} parent=1 // pred_fallthru
      _
    // Predicated region
    $region22: #{tpu_custom_call.1} parent=1 // pred_check
      _
    $region23: #{tpu_custom_call.1} parent=1 // pred_check_branch
      %54 = sbr.rel (0) target = $region25
    $region24: #{tpu_custom_call.1} parent=1 // pred_region
      %55 = dma.done [#allocation3], 512
    $region25: #{tpu_custom_call.1} parent=1 // pred_fallthru
      _
    // Predicated region
    $region26: #{tpu_custom_call.1} parent=1 // pred_check
      _
    $region27: #{tpu_custom_call.1} parent=1 // pred_check_branch
      %57 = sbr.rel (0) target = $region29
    $region28: #{tpu_custom_call.1} parent=1 // pred_region
      %58 = dma.done [#allocation6], 2048
    $region29: #{tpu_custom_call.1} parent=1 // pred_fallthru
      _
    // Predicated region
    $region30: #{tpu_custom_call.1} parent=1 // pred_check
      _
    $region31: #{tpu_custom_call.1} parent=1 // pred_check_branch
      %60 = sbr.rel (0) target = $region33
    $region32: #{tpu_custom_call.1} parent=1 // pred_region
      %61 = dma.done [#allocation6], 1024
    $region33: #{tpu_custom_call.1} parent=1 // pred_fallthru
      _
    %v63 = vld [vmem:[#allocation2] sm:$0xff]
    %v64 = vld [vmem:[#allocation2 + $0x8] sm:$0xff]
    %v65 = vld [vmem:[#allocation2 + $0x10] sm:$0xff]
    %v66 = vld [vmem:[#allocation2 + $0x18] sm:$0xff]
    %v67 = vadd.f32 %v63, %v64
    %68 = vadd.xlane.f32.xlu0 %v67
    %v69 = vpop.xlane.xlu0 %68
    %v70 = vadd.f32 %v65, %v66
    %71 = vadd.xlane.f32.xlu0 %v70
    %v72 = vpop.xlane.xlu0 %71
    %v73 = vrcp.pop 256.0
    %v74 = vmul.f32 %v69, %v73
    %v75 = vmul.f32 %v72, %v73
    %v76 = vsub.f32 %v63, %v74
    %v77 = vsub.f32 %v64, %v74
    %v78 = vsub.f32 %v65, %v75
    %v79 = vsub.f32 %v66, %v75
    %v80 = vmul.f32 %v76, %v76
    %v81 = vmul.f32 %v77, %v77
    %v82 = vmul.f32 %v78, %v78
    %v83 = vmul.f32 %v79, %v79
    %v84 = vadd.f32 %v80, %v81
    %85 = vadd.xlane.f32.xlu0 %v84
    %v86 = vpop.xlane.xlu0 %85
    %v87 = vadd.f32 %v82, %v83
    %88 = vadd.xlane.f32.xlu0 %v87
    %v89 = vpop.xlane.xlu0 %88
    %v90 = vmul.f32 %v86, %v73
    %v91 = vmul.f32 %v89, %v73
    %v92 = vadd.f32 %v90, 1e-05
    %v93 = vadd.f32 %v91, 1e-05
    %v94 = vrsqrt.pop %v92
    %v95 = vrsqrt.pop %v93
    %v96 = vmul.f32 %v76, %v94
    %v97 = vmul.f32 %v77, %v94
    %v98 = vmul.f32 %v78, %v95
    %v99 = vmul.f32 %v79, %v95
    %v100 = vpack.c.bf16 %v98, %v96
    %v101 = vpack.c.bf16 %v99, %v97
    %v102 = vld [vmem:[#allocation5] sm:$0xf]
    %v103 = vld [vmem:[#allocation5 + $0x4] sm:$0xf]
    %v104 = vld [vmem:[#allocation5 + $0x8] sm:$0xf]
    %v105 = vld [vmem:[#allocation5 + $0xc] sm:$0xf]
    %v106 = vld [vmem:[#allocation5 + $0x10] sm:$0xf]
    %v107 = vld [vmem:[#allocation5 + $0x14] sm:$0xf]
    %v108 = vld [vmem:[#allocation5 + $0x18] sm:$0xf]
    %v109 = vld [vmem:[#allocation5 + $0x1c] sm:$0xf]
    %v110 = vld [vmem:[#allocation5 + $0x20] sm:$0xf]
    %v111 = vld [vmem:[#allocation5 + $0x24] sm:$0xf]
    %v112 = vld [vmem:[#allocation5 + $0x28] sm:$0xf]
    %v113 = vld [vmem:[#allocation5 + $0x2c] sm:$0xf]
    %v114 = vld [vmem:[#allocation5 + $0x30] sm:$0xf]
    %v115 = vld [vmem:[#allocation5 + $0x34] sm:$0xf]
    %v116 = vld [vmem:[#allocation5 + $0x38] sm:$0xf]
    %v117 = vld [vmem:[#allocation5 + $0x3c] sm:$0xf]
    %v118 = vld [vmem:[#allocation5 + $0x40] sm:$0xf]
    %v119 = vld [vmem:[#allocation5 + $0x44] sm:$0xf]
    %v120 = vld [vmem:[#allocation5 + $0x48] sm:$0xf]
    %v121 = vld [vmem:[#allocation5 + $0x4c] sm:$0xf]
    %v122 = vld [vmem:[#allocation5 + $0x50] sm:$0xf]
    %v123 = vld [vmem:[#allocation5 + $0x54] sm:$0xf]
    %v124 = vld [vmem:[#allocation5 + $0x58] sm:$0xf]
    %v125 = vld [vmem:[#allocation5 + $0x5c] sm:$0xf]
    %v126 = vld [vmem:[#allocation5 + $0x60] sm:$0xf]
    %v127 = vld [vmem:[#allocation5 + $0x64] sm:$0xf]
    %v128 = vld [vmem:[#allocation5 + $0x68] sm:$0xf]
    %v129 = vld [vmem:[#allocation5 + $0x6c] sm:$0xf]
    %v130 = vld [vmem:[#allocation5 + $0x70] sm:$0xf]
    %v131 = vld [vmem:[#allocation5 + $0x74] sm:$0xf]
    %v132 = vld [vmem:[#allocation5 + $0x78] sm:$0xf]
    %v133 = vld [vmem:[#allocation5 + $0x7c] sm:$0xf]
    %v134 = vld [vmem:[%s2] sm:$0x1]
    %v136 = vlaneseq
    %v137 = vshrl.u32 %v136, 7
    %v138 = vsub.s32 0, %v137
    %v139 = vrot.slane %v134, %v138
    %v173 = vunpack.c.l.b16 %v102
    %v174 = vunpack.c.l.b16 %v103
    %v175 = vunpack.c.l.b16 %v104
    %v176 = vunpack.c.l.b16 %v105
    %v177 = vunpack.c.l.b16 %v106
    %v178 = vunpack.c.l.b16 %v107
    %v179 = vunpack.c.l.b16 %v108
    %v180 = vunpack.c.l.b16 %v109
    %v181 = vunpack.c.l.b16 %v110
    %v182 = vunpack.c.l.b16 %v111
    %v183 = vunpack.c.l.b16 %v112
    %v184 = vunpack.c.l.b16 %v113
    %v185 = vunpack.c.l.b16 %v114
    %v186 = vunpack.c.l.b16 %v115
    %v187 = vunpack.c.l.b16 %v116
    %v188 = vunpack.c.l.b16 %v117
    %v189 = vunpack.c.l.b16 %v118
    %v190 = vunpack.c.l.b16 %v119
    %v191 = vunpack.c.l.b16 %v120
    %v192 = vunpack.c.l.b16 %v121
    %v193 = vunpack.c.l.b16 %v122
    %v194 = vunpack.c.l.b16 %v123
    %v195 = vunpack.c.l.b16 %v124
    %v196 = vunpack.c.l.b16 %v125
    %v197 = vunpack.c.l.b16 %v126
    %v198 = vunpack.c.l.b16 %v127
    %v199 = vunpack.c.l.b16 %v128
    %v200 = vunpack.c.l.b16 %v129
    %v201 = vunpack.c.l.b16 %v130
    %v202 = vunpack.c.l.b16 %v131
    %v203 = vunpack.c.l.b16 %v132
    %v204 = vunpack.c.l.b16 %v133
    %v205 = vpack.c.b16 %v174, %v173
    %v206 = vpack.c.b16 %v176, %v175
    %v207 = vpack.c.b16 %v178, %v177
    %v208 = vpack.c.b16 %v180, %v179
    %v209 = vpack.c.b16 %v182, %v181
    %v210 = vpack.c.b16 %v184, %v183
    %v211 = vpack.c.b16 %v186, %v185
    %v212 = vpack.c.b16 %v188, %v187
    %v213 = vpack.c.b16 %v190, %v189
    %v214 = vpack.c.b16 %v192, %v191
    %v215 = vpack.c.b16 %v194, %v193
    %v216 = vpack.c.b16 %v196, %v195
    %v217 = vpack.c.b16 %v198, %v197
    %v218 = vpack.c.b16 %v200, %v199
    %v219 = vpack.c.b16 %v202, %v201
    %v220 = vpack.c.b16 %v204, %v203
    %237 = vmatprep.subr.bf16.mxu0 0
    %238 = vmatpush1.bf16.msra.mxu0 %v212
    %239 = vmatprep.subr.bf16.mxu0 0
    %240 = vmatpush1.bf16.msra.mxu0 %v211
    %241 = vmatprep.subr.bf16.mxu0 0
    %242 = vmatpush1.bf16.msra.mxu0 %v210
    %243 = vmatprep.subr.bf16.mxu0 0
    %244 = vmatpush1.bf16.msra.mxu0 %v209
    %245 = vmatprep.subr.bf16.mxu0 0
    %246 = vmatpush1.bf16.msra.mxu0 %v208
    %247 = vmatprep.subr.bf16.mxu0 0
    %248 = vmatpush1.bf16.msra.mxu0 %v207
    %249 = vmatprep.subr.bf16.mxu0 0
    %250 = vmatpush1.bf16.msra.mxu0 %v206
    %251 = vmatprep.subr.bf16.mxu0 0
    %252 = vmatpush1.bf16.msra.mxu0 %v205
    %253 = vmatprep.subr.bf16.mxu0 0
    %254 = vmatpush2.bf16.msra.mxu0 %v220
    %255 = vmatprep.subr.bf16.mxu0 0
    %256 = vmatpush2.bf16.msra.mxu0 %v219
    %257 = vmatprep.subr.bf16.mxu0 0
    %258 = vmatpush2.bf16.msra.mxu0 %v218
    %259 = vmatprep.subr.bf16.mxu0 0
    %260 = vmatpush2.bf16.msra.mxu0 %v217
    %261 = vmatprep.subr.bf16.mxu0 0
    %262 = vmatpush2.bf16.msra.mxu0 %v216
    %263 = vmatprep.subr.bf16.mxu0 0
    %264 = vmatpush2.bf16.msra.mxu0 %v215
    %265 = vmatprep.subr.bf16.mxu0 0
    %266 = vmatpush2.bf16.msra.mxu0 %v214
    %267 = vmatprep.subr.bf16.mxu0 0
    %268 = vmatpush2.bf16.msra.mxu0 %v213
    %269 = vmatprep.mubr.bf16.mxu0 %v101
    %270 = vmatmul.mubr.bf16.gmra.mxu0 %v100
    %v271 = vpop.f32.mrf.mxu0
    %v272 = vadd.f32 %v139, %v271
    %v273 = vpop.f32.mrf.mxu0
    %v274 = vpop.f32.mrf.mxu0
    %v275 = vadd.f32 %v139, %v274
    %v276 = vpop.f32.mrf.mxu0
    %277 = vdwg.mxu0
    %v278 = vmax.f32 %v272, 0.0
    %v279 = vmax.f32 %v275, 0.0
    %v280 = vpack.c.bf16 %v279, %v278
    %v281 = vld [vmem:[#allocation7] sm:$0xf]
    %v282 = vld [vmem:[#allocation7 + $0x4] sm:$0xf]
    %v283 = vld [vmem:[#allocation7 + $0x8] sm:$0xf]
    %v284 = vld [vmem:[#allocation7 + $0xc] sm:$0xf]
    %v285 = vld [vmem:[#allocation7 + $0x10] sm:$0xf]
    %v286 = vld [vmem:[#allocation7 + $0x14] sm:$0xf]
    %v287 = vld [vmem:[#allocation7 + $0x18] sm:$0xf]
    %v288 = vld [vmem:[#allocation7 + $0x1c] sm:$0xf]
    %v289 = vld [vmem:[#allocation7 + $0x20] sm:$0xf]
    %v290 = vld [vmem:[#allocation7 + $0x24] sm:$0xf]
    %v291 = vld [vmem:[#allocation7 + $0x28] sm:$0xf]
    %v292 = vld [vmem:[#allocation7 + $0x2c] sm:$0xf]
    %v293 = vld [vmem:[#allocation7 + $0x30] sm:$0xf]
    %v294 = vld [vmem:[#allocation7 + $0x34] sm:$0xf]
    %v295 = vld [vmem:[#allocation7 + $0x38] sm:$0xf]
    %v296 = vld [vmem:[#allocation7 + $0x3c] sm:$0xf]
    %v297 = vld [vmem:[%s4] sm:$0x1]
    %v299 = vlaneseq
    %v300 = vshrl.u32 %v299, 7
    %v301 = vsub.s32 0, %v300
    %v302 = vrot.slane %v297, %v301
    %v320 = vunpack.c.l.b16 %v281
    %v321 = vunpack.c.l.b16 %v282
    %v322 = vunpack.c.l.b16 %v283
    %v323 = vunpack.c.l.b16 %v284
    %v324 = vunpack.c.l.b16 %v285
    %v325 = vunpack.c.l.b16 %v286
    %v326 = vunpack.c.l.b16 %v287
    %v327 = vunpack.c.l.b16 %v288
    %v328 = vunpack.c.l.b16 %v289
    %v329 = vunpack.c.l.b16 %v290
    %v330 = vunpack.c.l.b16 %v291
    %v331 = vunpack.c.l.b16 %v292
    %v332 = vunpack.c.l.b16 %v293
    %v333 = vunpack.c.l.b16 %v294
    %v334 = vunpack.c.l.b16 %v295
    %v335 = vunpack.c.l.b16 %v296
    %v336 = vpack.c.b16 %v321, %v320
    %v337 = vpack.c.b16 %v323, %v322
    %v338 = vpack.c.b16 %v325, %v324
    %v339 = vpack.c.b16 %v327, %v326
    %v340 = vpack.c.b16 %v329, %v328
    %v341 = vpack.c.b16 %v331, %v330
    %v342 = vpack.c.b16 %v333, %v332
    %v343 = vpack.c.b16 %v335, %v334
    %352 = vmatprep.subr.bf16.mxu0 0
    %353 = vmatpush1.bf16.msra.mxu0 %v343
    %354 = vmatprep.subr.bf16.mxu0 0
    %355 = vmatpush1.bf16.msra.mxu0 %v342
    %356 = vmatprep.subr.bf16.mxu0 0
    %357 = vmatpush1.bf16.msra.mxu0 %v341
    %358 = vmatprep.subr.bf16.mxu0 0
    %359 = vmatpush1.bf16.msra.mxu0 %v340
    %360 = vmatprep.subr.bf16.mxu0 0
    %361 = vmatpush1.bf16.msra.mxu0 %v339
    %362 = vmatprep.subr.bf16.mxu0 0
    %363 = vmatpush1.bf16.msra.mxu0 %v338
    %364 = vmatprep.subr.bf16.mxu0 0
    %365 = vmatpush1.bf16.msra.mxu0 %v337
    %366 = vmatprep.subr.bf16.mxu0 0
    %367 = vmatpush1.bf16.msra.mxu0 %v336
    %368 = vmatprep.subr.bf16.mxu0 0
    %369 = vmatpush2.bf16.msra.mxu0 0
    %370 = vmatprep.subr.bf16.mxu0 0
    %371 = vmatpush2.bf16.msra.mxu0 0
    %372 = vmatprep.subr.bf16.mxu0 0
    %373 = vmatpush2.bf16.msra.mxu0 0
    %374 = vmatprep.subr.bf16.mxu0 0
    %375 = vmatpush2.bf16.msra.mxu0 0
    %376 = vmatprep.subr.bf16.mxu0 0
    %377 = vmatpush2.bf16.msra.mxu0 0
    %378 = vmatprep.subr.bf16.mxu0 0
    %379 = vmatpush2.bf16.msra.mxu0 0
    %380 = vmatprep.subr.bf16.mxu0 0
    %381 = vmatpush2.bf16.msra.mxu0 0
    %382 = vmatprep.subr.bf16.mxu0 0
    %383 = vmatpush2.bf16.msra.mxu0 0
    %384 = vmatprep.mubr.bf16.mxu0 0
    %385 = vmatmul.mubr.bf16.gmra.mxu0 %v280
    %v386 = vpop.f32.mrf.mxu0
    %v387 = vadd.f32 %v302, %v386
    %v388 = vpop.f32.mrf.mxu0
    %v389 = vpop.f32.mrf.mxu0
    %v390 = vadd.f32 %v302, %v389
    %v391 = vpop.f32.mrf.mxu0
    %392 = vdwg.mxu0
    %393 = vadd.xlane.f32.xlu0 %v387
    %v394 = vpop.xlane.xlu0 %393
    %395 = vadd.xlane.f32.xlu0 %v390
    %v396 = vpop.xlane.xlu0 %395
    %v397 = vrcp.pop 128.0
    %v398 = vmul.f32 %v394, %v397
    %v399 = vmul.f32 %v396, %v397
    %v400 = vsub.f32 %v387, %v398
    %v401 = vsub.f32 %v390, %v399
    %v402 = vmul.f32 %v400, %v400
    %v403 = vmul.f32 %v401, %v401
    %404 = vadd.xlane.f32.xlu0 %v402
    %v405 = vpop.xlane.xlu0 %404
    %406 = vadd.xlane.f32.xlu0 %v403
    %v407 = vpop.xlane.xlu0 %406
    %v408 = vmul.f32 %v405, %v397
    %v409 = vmul.f32 %v407, %v397
    %v410 = vadd.f32 %v408, 1e-05
    %v411 = vadd.f32 %v409, 1e-05
    %v412 = vrsqrt.pop %v410
    %v413 = vrsqrt.pop %v411
    %v414 = vmul.f32 %v400, %v412
    %v415 = vmul.f32 %v401, %v413
    %416 = vst [vmem:[#allocation8] sm:$0xff] %v414
    %417 = vst [vmem:[#allocation8 + $0x8] sm:$0xff] %v415
    // Predicated region
    $region34: #{tpu_custom_call.1} parent=1 // pred_check
      _
    $region35: #{tpu_custom_call.1} parent=1 // pred_check_branch
      %419 = sbr.rel (0) target = $region37
    $region36: #{tpu_custom_call.1} parent=1 // pred_region
      %s421 = ssub.s32 256, 256
      %422 = vsyncadd [#allocation4], %s421
      %s423 = sshll.u32 [#allocation8], 4
      %s424 = int_to_ptr.vmem [resolvable:$true] %s423
      %429 = dma.vmem_to_hbm [thread:$0]  %s424, 256, %s5, [#allocation4], 128, 128, 8
    $region37: #{tpu_custom_call.1} parent=1 // pred_fallthru
      _
    // Predicated region
    $region38: #{tpu_custom_call.1} parent=1 // pred_check
      _
    $region39: #{tpu_custom_call.1} parent=1 // pred_check_branch
      %431 = sbr.rel (0) target = $region41
    $region40: #{tpu_custom_call.1} parent=1 // pred_region
      %432 = dma.done [#allocation4], 256
    $region41: #{tpu_custom_call.1} parent=1 // pred_fallthru
      _
    %433 = vsyncpa [#allocation3], 1
    %434 = vsyncpa [#allocation6], 1
    %435 = vsyncpa [#allocation4], 1

</llo_original>
